<compile_context>
chip_gen: v7x
topology: tpu7x:2x2x1
jax: 0.10.0
libtpu: 0.0.40
codegen_flags: <defaults>
</compile_context>

<pallas_src>
import functools

import jax
import jax.numpy as jnp
from jax.experimental import pallas as pl
from jax.experimental.pallas import tpu as pltpu


def _round_up(x: int, m: int) -> int:
    return (x + m - 1) // m * m


def _maybe_cast(v, dtype):
    # Only emit a convert when the dtype actually changes (no redundant astype).
    return v if v.dtype == dtype else v.astype(dtype)


def _vmem_capacity_bytes() -> int:
    """Per-TensorCore VMEM capacity; falls back to the v7x minimum (64 MiB)."""
    try:
        return int(pltpu.get_tpu_info().vmem_capacity_bytes)
    except Exception:
        return 64 << 20


def _dqn_kernel(x_ref, w_ref, o_ref, *, dims):
    """Fused MLP in transposed layout: o = W3 @ relu(W2 @ relu(W1 @ x + b1) + b2) + b3.

    x_ref : [S, TILE_B]              (compute dtype)  -- batch along lanes
    w_ref : [rows, cols+1] packed    (compute dtype)  -- W1/W2/W3 row segments,
                                                          biases in column `bc`
    o_ref : [A, TILE_B]              (float32)        -- lane-dense output slab
    """
    n_in, n_h1, n_h2, n_out, r1, r2, r3, bc = dims

    xt = x_ref[...]                                   # (S, TILE_B)

    # Static slices into the packed parameter buffer (8-row aligned segments).
    w1 = w_ref[r1:r1 + n_h1, 0:n_in]                  # (H1, S)
    w2 = w_ref[r2:r2 + n_h2, 0:n_h1]                  # (H2, H1)
    w3 = w_ref[r3:r3 + n_out, 0:n_h2]                 # (A,  H2)
    b1 = w_ref[r1:r1 + n_h1, bc:bc + 1].astype(jnp.float32)   # (H1, 1)
    b2 = w_ref[r2:r2 + n_h2, bc:bc + 1].astype(jnp.float32)   # (H2, 1)
    b3 = w_ref[r3:r3 + n_out, bc:bc + 1].astype(jnp.float32)  # (A,  1)

    # fc1 + ReLU  (MXU dot with f32 accumulation; bias add + ReLU in f32 on VPU)
    z1 = jnp.dot(w1, xt, preferred_element_type=jnp.float32) + b1
    a1 = _maybe_cast(jnp.maximum(z1, 0.0), w_ref.dtype)

    # fc2 + ReLU
    z2 = jnp.dot(w2, a1, preferred_element_type=jnp.float32) + b2
    a2 = _maybe_cast(jnp.maximum(z2, 0.0), w_ref.dtype)

    # fc3 (no activation) -- lane-dense store along the batch dimension
    z3 = jnp.dot(w3, a2, preferred_element_type=jnp.float32) + b3
    o_ref[...] = z3.astype(o_ref.dtype)


def dqn_forward(x, params, *, tile_b=None, compute_dtype=jnp.bfloat16,
                max_tile_b=65536, transposed_input=False,
                transposed_output=False):
    """DQN forward: relu(fc1) -> relu(fc2) -> fc3.

    x: [B, state_size] (or [state_size, B] if transposed_input=True).
    params: PyTorch layout, w=(out, in), b=(out, 1).
    Returns [B, action_size] float32 (or [action_size, B] if transposed_output).

    tile_b: batch columns per grid step.  Default (None) auto-picks a large,
      128-aligned tile so each step streams >=~0.5-1 MiB, with >=2 steps when
      B >= 256 so both TensorCores are used on v7x.  Bigger is better on all of
      v5e/v6e/v7x; the footprint stays well under even v7x's 64 MiB VMEM.
    compute_dtype: dtype of the streamed x slab and the MXU operands.  bf16 is
      the default (halves HBM traffic of the dominant term on v5e/v6e/v7x);
      accumulation, bias add and ReLU are always float32.
    transposed_input / transposed_output: accept / produce lane-dense
      [features, batch] slabs to avoid the wrapper-side transpose round trips
      when the caller can keep that layout (this kernel is HBM-streaming bound).
    """
    w1, b1 = params["w1"], params["b1"]
    w2, b2 = params["w2"], params["b2"]
    w3, b3 = params["w3"], params["b3"]

    if transposed_input:
        S, B = x.shape
    else:
        B, S = x.shape
    H1, H2, A = w1.shape[0], w2.shape[0], w3.shape[0]
    item = jnp.dtype(compute_dtype).itemsize

    # --- generation-aware VMEM ceiling (v5e/v6e: 128 MiB, v7x: 64 MiB) -------
    vmem_cap = _vmem_capacity_bytes()
    vmem_ceiling = (vmem_cap * 3) // 4           # leave ~25% headroom

    # --- batch tiling: batch maps to lanes, so tiles are multiples of 128 ----
    b128 = _round_up(max(B, 1), 128)
    if tile_b is None:
        # >=2 steps when possible (v7x: keep both TCs busy), and cap the tile so
        # pad waste stays bounded while each step still moves >= ~0.5-1 MiB.
        n_steps = max(2 if b128 >= 256 else 1, pl.cdiv(b128, int(max_tile_b)))
        tile_b = _round_up(pl.cdiv(b128, n_steps), 128)
    else:
        tile_b = max(128, _round_up(int(tile_b), 128))
    # Safety clamp: double-buffered x/out blocks must fit under the VMEM ceiling.
    per_col = 2 * (_round_up(S, 8) * item + _round_up(A, 8) * 4)
    tile_cap = max(128, ((vmem_ceiling - (4 << 20)) // per_col) // 128 * 128)
    tile_b = min(tile_b, tile_cap)

    b_pad = _round_up(max(B, 1), tile_b)         # ragged last tile -> zero-pad
    grid = (b_pad // tile_b,)

    # --- lane-dense input slab [S, b_pad]; skip the pad copy when aligned ----
    x_t = x if transposed_input else x.T
    x_t = _maybe_cast(x_t, compute_dtype)
    if b_pad != B:
        x_t = jnp.zeros((S, b_pad), compute_dtype).at[:, :B].set(x_t)

    # --- pack W1/W2/W3 (+ biases as one extra column) into a single buffer ---
    #     (In a training/serving loop you would pre-pack this once.)
    r1 = 0
    r2 = _round_up(H1, 8)
    r3 = r2 + _round_up(H2, 8)
    rows = r3 + _round_up(A, 8)
    cols = max(S, H1, H2)
    bc = cols                                    # bias column index
    w_all = jnp.zeros((rows, cols + 1), compute_dtype)
    w_all = w_all.at[r1:r1 + H1, :S].set(w1.astype(compute_dtype))
    w_all = w_all.at[r2:r2 + H2, :H1].set(w2.astype(compute_dtype))
    w_all = w_all.at[r3:r3 + A, :H2].set(w3.astype(compute_dtype))
    w_all = w_all.at[r1:r1 + H1, bc].set(b1[:, 0].astype(compute_dtype))
    w_all = w_all.at[r2:r2 + H2, bc].set(b2[:, 0].astype(compute_dtype))
    w_all = w_all.at[r3:r3 + A, bc].set(b3[:, 0].astype(compute_dtype))

    # --- scoped-VMEM budget: 2x only the streamed x/out blocks; the resident
    #     (constant index_map) parameter buffer is counted once + slack. -------
    x_blk = _round_up(S, 8) * tile_b * item
    o_blk = _round_up(A, 8) * tile_b * 4
    w_byt = _round_up(rows, 8) * _round_up(cols + 1, 128) * item
    vmem_needed = 2 * (x_blk + o_blk) + w_byt + (2 << 20)
    vmem_limit = int(min(max(vmem_needed, 16 << 20), vmem_ceiling))

    kernel = functools.partial(_dqn_kernel, dims=(S, H1, H2, A, r1, r2, r3, bc))

    out_t = pl.pallas_call(
        kernel,
        out_shape=jax.ShapeDtypeStruct((A, b_pad), jnp.float32),
        grid=grid,
        in_specs=[
            # streamed batch slab: pipelined / double-buffered across the grid
            pl.BlockSpec((S, tile_b), lambda i: (0, i)),
            # packed params: constant index_map -> DMA'd once, VMEM-resident
            pl.BlockSpec((rows, cols + 1), lambda i: (0, 0)),
        ],
        out_specs=pl.BlockSpec((A, tile_b), lambda i: (0, i)),
        compiler_params=pltpu.CompilerParams(
            dimension_semantics=("parallel",),   # shard batch grid across TCs
            vmem_limit_bytes=vmem_limit,
        ),
    )(x_t, w_all)

    if transposed_output:
        return out_t[:, :B]
    return out_t[:, :B].T        # wrapper-side layout plumbing (skippable above)


def init_dqn_params(key, state_size, action_size, hidden=16):
    """nn.Linear-style init (uniform +-1/sqrt(fan_in)); PyTorch layout w=(out,in), b=(out,1)."""
    def linear(k, fan_in, fan_out):
        kw, kb = jax.random.split(k)
        bound = 1.0 / (fan_in ** 0.5)
        w = jax.random.uniform(kw, (fan_out, fan_in), jnp.float32, -bound, bound)
        b = jax.random.uniform(kb, (fan_out, 1), jnp.float32, -bound, bound)
        return w, b

    k1, k2, k3 = jax.random.split(key, 3)
    w1, b1 = linear(k1, state_size, hidden)
    w2, b2 = linear(k2, hidden, hidden)
    w3, b3 = linear(k3, hidden, action_size)
    return {"w1": w1, "b1": b1, "w2": w2, "b2": b2, "w3": w3, "b3": b3}


def dqn_reference(x, params):
    """Pure-JAX reference for correctness check."""
    h1 = jnp.maximum(x @ params["w1"].T + params["b1"][:, 0], 0.0)
    h2 = jnp.maximum(h1 @ params["w2"].T + params["b2"][:, 0], 0.0)
    return h2 @ params["w3"].T + params["b3"][:, 0]


if __name__ == "__main__":
    key = jax.random.PRNGKey(0)
    k_params, k_x, k_x2 = jax.random.split(key, 3)

    batch, state_size, action_size = 8, 8, 4
    params = init_dqn_params(k_params, state_size, action_size)

    # --- small (acting / inference) batch, f32 path, tight tolerance ---------
    x = jax.random.normal(k_x, (batch, state_size), dtype=jnp.float32)
    ref = dqn_reference(x, params)
    out = jax.block_until_ready(dqn_forward(x, params, compute_dtype=jnp.float32))
    assert out.shape == (batch, action_size)
    assert jnp.allclose(out, ref, atol=1e-5, rtol=1e-5), "f32 mismatch vs reference"

    # --- multi-tile ragged batch: exercises the pipelined batch grid path ----
    x_big = jax.random.normal(k_x2, (300, state_size), dtype=jnp.float32)
    ref_big = dqn_reference(x_big, params)
    out_big = jax.block_until_ready(
        dqn_forward(x_big, params, tile_b=128, compute_dtype=jnp.float32))
    assert out_big.shape == (300, action_size)
    assert jnp.allclose(out_big, ref_big, atol=1e-5, rtol=1e-5), "grid path mismatch"

    # --- default path: auto tile (>=2 parallel steps), bf16 streaming --------
    out_bf16 = jax.block_until_ready(dqn_forward(x_big, params))
    assert out_bf16.shape == (300, action_size)
    assert jnp.allclose(out_bf16, ref_big, atol=5e-2, rtol=5e-2), "bf16 mismatch"

    # --- lane-dense fast path: transposed in/out, no wrapper round trips -----
    out_tt = jax.block_until_ready(
        dqn_forward(x.T, params, compute_dtype=jnp.float32,
                    transposed_input=True, transposed_output=True))
    assert out_tt.shape == (action_size, batch)
    assert jnp.allclose(out_tt.T, ref, atol=1e-5, rtol=1e-5), "transposed path mismatch"

    print("KERNEL_OK")
</pallas_src>

<mosaic_0001>
module attributes {stable_mosaic.version = 11 : i64} {
  func.func @_dqn_kernel(%arg0: i32, %arg1: memref<8x128xf32, #tpu.memory_space<vmem>>, %arg2: memref<40x17xf32, #tpu.memory_space<vmem>>, %arg3: memref<4x128xf32, #tpu.memory_space<vmem>>) attributes {dimension_semantics = [#tpu.dimension_semantics<parallel>], iteration_bounds = array<i64: 1>, scalar_prefetch = 0 : i64, scratch_operands = 0 : i64, tpu.core_type = #tpu.core_type<tc>, window_params = [{transform_indices = @transform_0, window_bounds = array<i64: 8, 128>}, {pipeline_mode = #tpu.pipeline_mode<synchronous>, transform_indices = @transform_1, window_bounds = array<i64: 40, 17>}, {transform_indices = @transform_2, window_bounds = array<i64: 4, 128>}]} {
    %c0 = arith.constant 0 : index
    %c0_0 = arith.constant 0 : index
    %0 = vector.load %arg1[%c0, %c0_0] : memref<8x128xf32, #tpu.memory_space<vmem>>, vector<8x128xf32>
    %c0_1 = arith.constant 0 : index
    %c0_2 = arith.constant 0 : index
    %1 = vector.load %arg2[%c0_1, %c0_2] : memref<40x17xf32, #tpu.memory_space<vmem>>, vector<16x8xf32>
    %c16 = arith.constant 16 : index
    %c0_3 = arith.constant 0 : index
    %2 = vector.load %arg2[%c16, %c0_3] : memref<40x17xf32, #tpu.memory_space<vmem>>, vector<16x16xf32>
    %c32 = arith.constant 32 : index
    %c0_4 = arith.constant 0 : index
    %3 = vector.load %arg2[%c32, %c0_4] : memref<40x17xf32, #tpu.memory_space<vmem>>, vector<4x16xf32>
    %c0_5 = arith.constant 0 : index
    %c16_6 = arith.constant 16 : index
    %4 = vector.load %arg2[%c0_5, %c16_6] : memref<40x17xf32, #tpu.memory_space<vmem>>, vector<16x1xf32>
    %c16_7 = arith.constant 16 : index
    %c16_8 = arith.constant 16 : index
    %5 = vector.load %arg2[%c16_7, %c16_8] : memref<40x17xf32, #tpu.memory_space<vmem>>, vector<16x1xf32>
    %c32_9 = arith.constant 32 : index
    %c16_10 = arith.constant 16 : index
    %6 = vector.load %arg2[%c32_9, %c16_10] : memref<40x17xf32, #tpu.memory_space<vmem>>, vector<4x1xf32>
    %cst = arith.constant dense<0.000000e+00> : vector<16x128xf32>
    %7 = tpu.matmul %1, %0, %cst {dimension_numbers = #tpu.dot_dimension_numbers<[1], [0], [0], [1], [0, 0, 1, 1], [], []>} : vector<16x8xf32>, vector<8x128xf32>, vector<16x128xf32> -> vector<16x128xf32>
    %8 = vector.broadcast %4 : vector<16x1xf32> to vector<16x128xf32>
    %9 = arith.addf %7, %8 : vector<16x128xf32>
    %cst_11 = arith.constant 0.000000e+00 : f32
    %10 = vector.broadcast %cst_11 : f32 to vector<16x128xf32>
    %11 = arith.maximumf %9, %10 : vector<16x128xf32>
    %cst_12 = arith.constant dense<0.000000e+00> : vector<16x128xf32>
    %12 = tpu.matmul %2, %11, %cst_12 {dimension_numbers = #tpu.dot_dimension_numbers<[1], [0], [0], [1], [0, 0, 1, 1], [], []>} : vector<16x16xf32>, vector<16x128xf32>, vector<16x128xf32> -> vector<16x128xf32>
    %13 = vector.broadcast %5 : vector<16x1xf32> to vector<16x128xf32>
    %14 = arith.addf %12, %13 : vector<16x128xf32>
    %cst_13 = arith.constant 0.000000e+00 : f32
    %15 = vector.broadcast %cst_13 : f32 to vector<16x128xf32>
    %16 = arith.maximumf %14, %15 : vector<16x128xf32>
    %cst_14 = arith.constant dense<0.000000e+00> : vector<4x128xf32>
    %17 = tpu.matmul %3, %16, %cst_14 {dimension_numbers = #tpu.dot_dimension_numbers<[1], [0], [0], [1], [0, 0, 1, 1], [], []>} : vector<4x16xf32>, vector<16x128xf32>, vector<4x128xf32> -> vector<4x128xf32>
    %18 = vector.broadcast %6 : vector<4x1xf32> to vector<4x128xf32>
    %19 = arith.addf %17, %18 : vector<4x128xf32>
    %c0_15 = arith.constant 0 : index
    %c0_16 = arith.constant 0 : index
    %20 = vector.load %arg3[%c0_15, %c0_16] : memref<4x128xf32, #tpu.memory_space<vmem>>, vector<4x128xf32>
    tpu.vector_store %arg3[%c0_15, %c0_16], %19 {strides = array<i32>} : memref<4x128xf32, #tpu.memory_space<vmem>>, vector<4x128xf32>,
    return
  }
  func.func @transform_0(%arg0: i32) -> (i32, i32) {
    %c0_i32 = arith.constant 0 : i32
    %c0_i32_0 = arith.constant 0 : i32
    return %c0_i32, %arg0 : i32, i32
  }
  func.func @transform_1(%arg0: i32) -> (i32, i32) {
    %c0_i32 = arith.constant 0 : i32
    %c0_i32_0 = arith.constant 0 : i32
    %c0_i32_1 = arith.constant 0 : i32
    return %c0_i32, %c0_i32_0 : i32, i32
  }
  func.func @transform_2(%arg0: i32) -> (i32, i32) {
    %c0_i32 = arith.constant 0 : i32
    %c0_i32_0 = arith.constant 0 : i32
    return %c0_i32, %arg0 : i32, i32
  }
}

</mosaic_0001>

<llo_original>
// kernel: tpu_custom_call.1
$region0: #{tpu_custom_call.1}
  #allocation0 [shape = 'u32[]', space=smem, size = 0x4, offset = 0x4, fixed_abs, tag = 'smem constant byte address 0x4 - core index']
  #allocation1 [shape = 'u32[144,128]{1,0:T(1,128)}', space=vmem, size = 0x12000, scoped, tag = 'internal scratch']
  %s0 = inlined_call_operand.vmem [shape: f32[8,128], index: 0, kind: input, shape index: {}]
  %s1 = inlined_call_operand.vmem [shape: f32[40,17], index: 1, kind: input, shape index: {}]
  %s2 = inlined_call_operand.hbm [shape: f32[4,128], index: 2, kind: output, shape index: {}]
  %s3 = sld [smem:[#allocation0]]
  $region18: #{tpu_custom_call.1} parent=0
    _
  %s5 = ssub.s32 1, %s3
  %s6 = scalar_select 0, %s5, %s3
  $region1: #{tpu_custom_call.1} parent=0
    #allocation2 [shape = 'u8[2048]{0}', space=vmem, size = 0x800, scoped, tag = 'output window, operand 0, single buffered']
    #allocation3 [shape = 's32[1]{0}', space=sflag, size = 0x4, scoped, tag = 'scoped memory for tpu_custom_call.1']
    %7 = vsyncpa [#allocation3], 0
    // Predicated region
    $region2: #{tpu_custom_call.1} parent=1 // pred_check
      _
    $region3: #{tpu_custom_call.1} parent=1 // pred_check_branch
      %9 = sbr.rel (0) target = $region5
    $region4: #{tpu_custom_call.1} parent=1 // pred_region
      _
    $region5: #{tpu_custom_call.1} parent=1 // pred_fallthru
      _
    // Predicated region
    $region6: #{tpu_custom_call.1} parent=1 // pred_check
      _
    $region7: #{tpu_custom_call.1} parent=1 // pred_check_branch
      %11 = sbr.rel (0) target = $region9
    $region8: #{tpu_custom_call.1} parent=1 // pred_region
      _
    $region9: #{tpu_custom_call.1} parent=1 // pred_fallthru
      _
    %v12 = vld [vmem:[%s0] sm:$0xff]
    %v13 = vld [vmem:[%s1] sm:$0xff]
    %v14 = vld [vmem:[%s1 + $0x8] sm:$0xff]
    %v15 = vld [vmem:[%s1 + $0x10] sm:$0xff]
    %v16 = vld [vmem:[%s1 + $0x18] sm:$0xff]
    %v17 = vld [vmem:[%s1 + $0x20] sm:$0xf]
    %19 = vset.pattern.permute.xlu0 16
    %20 = vperm.xlu0 %19, %v13
    %v21 = vpop.permute.xlu0 %20
    %24 = vset.pattern.permute.xlu0 16
    %25 = vperm.xlu0 %24, %v14
    %v26 = vpop.permute.xlu0 %25
    %vm28 = vcmask 64512
    %v29 = vsel %vm28, %v13, 0
    %v31 = vsel %vm28, %v14, 0
    %33 = vmatprep.subr.mxu0 0.0
    %34 = vmatpush1.msra.mxu0 %v12
    %35 = vmatprep.subr.mxu0 0.0
    %36 = vmatpush1.msra.mxu0 0.0
    %37 = vmatprep.subr.mxu0 0.0
    %38 = vmatpush1.msra.mxu0 0.0
    %39 = vmatprep.subr.mxu0 0.0
    %40 = vmatpush1.msra.mxu0 0.0
    %41 = vmatprep.subr.mxu0 0.0
    %42 = vmatpush1.msra.mxu0 0.0
    %43 = vmatprep.subr.mxu0 0.0
    %44 = vmatpush1.msra.mxu0 0.0
    %45 = vmatprep.subr.mxu0 0.0
    %46 = vmatpush1.msra.mxu0 0.0
    %47 = vmatprep.subr.mxu0 0.0
    %48 = vmatpush1.msra.mxu0 0.0
    %49 = vmatprep.subr.mxu0 0.0
    %50 = vmatpush1.msra.mxu0 0.0
    %51 = vmatprep.subr.mxu0 0.0
    %52 = vmatpush1.msra.mxu0 0.0
    %53 = vmatprep.subr.mxu0 0.0
    %54 = vmatpush1.msra.mxu0 0.0
    %55 = vmatprep.subr.mxu0 0.0
    %56 = vmatpush1.msra.mxu0 0.0
    %57 = vmatprep.subr.mxu0 0.0
    %58 = vmatpush1.msra.mxu0 0.0
    %59 = vmatprep.subr.mxu0 0.0
    %60 = vmatpush1.msra.mxu0 0.0
    %61 = vmatprep.subr.mxu0 0.0
    %62 = vmatpush1.msra.mxu0 0.0
    %63 = vmatprep.subr.mxu0 0.0
    %64 = vmatpush1.msra.mxu0 0.0
    %65 = vmatprep.subr.mxu0 0.0
    %66 = vmatpush1.msra.mxu0 0.0
    %67 = vmatprep.subr.mxu0 0.0
    %68 = vmatpush1.msra.mxu0 0.0
    %69 = vmatprep.subr.mxu0 0.0
    %70 = vmatpush1.msra.mxu0 0.0
    %71 = vmatprep.subr.mxu0 0.0
    %72 = vmatpush1.msra.mxu0 0.0
    %73 = vmatprep.subr.mxu0 0.0
    %74 = vmatpush1.msra.mxu0 0.0
    %75 = vmatprep.subr.mxu0 0.0
    %76 = vmatpush1.msra.mxu0 0.0
    %77 = vmatprep.subr.mxu0 0.0
    %78 = vmatpush1.msra.mxu0 0.0
    %79 = vmatprep.subr.mxu0 0.0
    %80 = vmatpush1.msra.mxu0 0.0
    %81 = vmatprep.subr.mxu0 0.0
    %82 = vmatpush1.msra.mxu0 0.0
    %83 = vmatprep.subr.mxu0 0.0
    %84 = vmatpush1.msra.mxu0 0.0
    %85 = vmatprep.subr.mxu0 0.0
    %86 = vmatpush1.msra.mxu0 0.0
    %87 = vmatprep.subr.mxu0 0.0
    %88 = vmatpush1.msra.mxu0 0.0
    %89 = vmatprep.subr.mxu0 0.0
    %90 = vmatpush1.msra.mxu0 0.0
    %91 = vmatprep.subr.mxu0 0.0
    %92 = vmatpush1.msra.mxu0 0.0
    %93 = vmatprep.subr.mxu0 0.0
    %94 = vmatpush1.msra.mxu0 0.0
    %95 = vmatprep.subr.mxu0 0.0
    %96 = vmatpush1.msra.mxu0 0.0
    %97 = vmatprep.mubr.f32.mxu0 0.0
    %98 = vmatmul.mubr.f32.gmra.mrb[0].mxu0 %v29
    %v99 = vpop.f32.mrb[0].mxu0
    %v100 = vadd.f32 %v21, %v99
    %v101 = vpop.f32.mrb[0].mxu0
    %102 = vmatprep.mubr.f32.mxu0 0.0
    %103 = vmatmul.mubr.f32.gmra.mrb[0].mxu0 %v31
    %v104 = vpop.f32.mrb[0].mxu0
    %v105 = vadd.f32 %v26, %v104
    %v106 = vpop.f32.mrb[0].mxu0
    %107 = vdwg.mxu0
    %v108 = vmax.f32 %v100, 0.0
    %v109 = vmax.f32 %v105, 0.0
    %111 = vset.pattern.permute.xlu0 16
    %112 = vperm.xlu0 %111, %v15
    %v113 = vpop.permute.xlu0 %112
    %116 = vset.pattern.permute.xlu0 16
    %117 = vperm.xlu0 %116, %v16
    %v118 = vpop.permute.xlu0 %117
    %vm120 = vcmask 130048
    %v121 = vsel %vm120, %v15, 0
    %v123 = vsel %vm120, %v16, 0
    %125 = vmatprep.subr.mxu0 0.0
    %126 = vmatpush1.msra.mxu0 %v108
    %127 = vmatprep.subr.mxu0 0.0
    %128 = vmatpush1.msra.mxu0 %v109
    %129 = vmatprep.subr.mxu0 0.0
    %130 = vmatpush1.msra.mxu0 0.0
    %131 = vmatprep.subr.mxu0 0.0
    %132 = vmatpush1.msra.mxu0 0.0
    %133 = vmatprep.subr.mxu0 0.0
    %134 = vmatpush1.msra.mxu0 0.0
    %135 = vmatprep.subr.mxu0 0.0
    %136 = vmatpush1.msra.mxu0 0.0
    %137 = vmatprep.subr.mxu0 0.0
    %138 = vmatpush1.msra.mxu0 0.0
    %139 = vmatprep.subr.mxu0 0.0
    %140 = vmatpush1.msra.mxu0 0.0
    %141 = vmatprep.subr.mxu0 0.0
    %142 = vmatpush1.msra.mxu0 0.0
    %143 = vmatprep.subr.mxu0 0.0
    %144 = vmatpush1.msra.mxu0 0.0
    %145 = vmatprep.subr.mxu0 0.0
    %146 = vmatpush1.msra.mxu0 0.0
    %147 = vmatprep.subr.mxu0 0.0
    %148 = vmatpush1.msra.mxu0 0.0
    %149 = vmatprep.subr.mxu0 0.0
    %150 = vmatpush1.msra.mxu0 0.0
    %151 = vmatprep.subr.mxu0 0.0
    %152 = vmatpush1.msra.mxu0 0.0
    %153 = vmatprep.subr.mxu0 0.0
    %154 = vmatpush1.msra.mxu0 0.0
    %155 = vmatprep.subr.mxu0 0.0
    %156 = vmatpush1.msra.mxu0 0.0
    %157 = vmatprep.subr.mxu0 0.0
    %158 = vmatpush1.msra.mxu0 0.0
    %159 = vmatprep.subr.mxu0 0.0
    %160 = vmatpush1.msra.mxu0 0.0
    %161 = vmatprep.subr.mxu0 0.0
    %162 = vmatpush1.msra.mxu0 0.0
    %163 = vmatprep.subr.mxu0 0.0
    %164 = vmatpush1.msra.mxu0 0.0
    %165 = vmatprep.subr.mxu0 0.0
    %166 = vmatpush1.msra.mxu0 0.0
    %167 = vmatprep.subr.mxu0 0.0
    %168 = vmatpush1.msra.mxu0 0.0
    %169 = vmatprep.subr.mxu0 0.0
    %170 = vmatpush1.msra.mxu0 0.0
    %171 = vmatprep.subr.mxu0 0.0
    %172 = vmatpush1.msra.mxu0 0.0
    %173 = vmatprep.subr.mxu0 0.0
    %174 = vmatpush1.msra.mxu0 0.0
    %175 = vmatprep.subr.mxu0 0.0
    %176 = vmatpush1.msra.mxu0 0.0
    %177 = vmatprep.subr.mxu0 0.0
    %178 = vmatpush1.msra.mxu0 0.0
    %179 = vmatprep.subr.mxu0 0.0
    %180 = vmatpush1.msra.mxu0 0.0
    %181 = vmatprep.subr.mxu0 0.0
    %182 = vmatpush1.msra.mxu0 0.0
    %183 = vmatprep.subr.mxu0 0.0
    %184 = vmatpush1.msra.mxu0 0.0
    %185 = vmatprep.subr.mxu0 0.0
    %186 = vmatpush1.msra.mxu0 0.0
    %187 = vmatprep.subr.mxu0 0.0
    %188 = vmatpush1.msra.mxu0 0.0
    %189 = vmatprep.mubr.f32.mxu0 0.0
    %190 = vmatmul.mubr.f32.gmra.mrb[0].mxu0 %v121
    %v191 = vpop.f32.mrb[0].mxu0
    %v192 = vadd.f32 %v113, %v191
    %v193 = vpop.f32.mrb[0].mxu0
    %194 = vmatprep.mubr.f32.mxu0 0.0
    %195 = vmatmul.mubr.f32.gmra.mrb[0].mxu0 %v123
    %v196 = vpop.f32.mrb[0].mxu0
    %v197 = vadd.f32 %v118, %v196
    %v198 = vpop.f32.mrb[0].mxu0
    %199 = vdwg.mxu0
    %v200 = vmax.f32 %v192, 0.0
    %v201 = vmax.f32 %v197, 0.0
    %203 = vset.pattern.permute.xlu0 16
    %204 = vperm.xlu0 %203, %v17
    %v205 = vpop.permute.xlu0 %204
    %v207 = vsel %vm120, %v17, 0
    %209 = vmatprep.subr.mxu0 0.0
    %210 = vmatpush1.msra.mxu0 %v200
    %211 = vmatprep.subr.mxu0 0.0
    %212 = vmatpush1.msra.mxu0 %v201
    %213 = vmatprep.subr.mxu0 0.0
    %214 = vmatpush1.msra.mxu0 0.0
    %215 = vmatprep.subr.mxu0 0.0
    %216 = vmatpush1.msra.mxu0 0.0
    %217 = vmatprep.subr.mxu0 0.0
    %218 = vmatpush1.msra.mxu0 0.0
    %219 = vmatprep.subr.mxu0 0.0
    %220 = vmatpush1.msra.mxu0 0.0
    %221 = vmatprep.subr.mxu0 0.0
    %222 = vmatpush1.msra.mxu0 0.0
    %223 = vmatprep.subr.mxu0 0.0
    %224 = vmatpush1.msra.mxu0 0.0
    %225 = vmatprep.subr.mxu0 0.0
    %226 = vmatpush1.msra.mxu0 0.0
    %227 = vmatprep.subr.mxu0 0.0
    %228 = vmatpush1.msra.mxu0 0.0
    %229 = vmatprep.subr.mxu0 0.0
    %230 = vmatpush1.msra.mxu0 0.0
    %231 = vmatprep.subr.mxu0 0.0
    %232 = vmatpush1.msra.mxu0 0.0
    %233 = vmatprep.subr.mxu0 0.0
    %234 = vmatpush1.msra.mxu0 0.0
    %235 = vmatprep.subr.mxu0 0.0
    %236 = vmatpush1.msra.mxu0 0.0
    %237 = vmatprep.subr.mxu0 0.0
    %238 = vmatpush1.msra.mxu0 0.0
    %239 = vmatprep.subr.mxu0 0.0
    %240 = vmatpush1.msra.mxu0 0.0
    %241 = vmatprep.subr.mxu0 0.0
    %242 = vmatpush1.msra.mxu0 0.0
    %243 = vmatprep.subr.mxu0 0.0
    %244 = vmatpush1.msra.mxu0 0.0
    %245 = vmatprep.subr.mxu0 0.0
    %246 = vmatpush1.msra.mxu0 0.0
    %247 = vmatprep.subr.mxu0 0.0
    %248 = vmatpush1.msra.mxu0 0.0
    %249 = vmatprep.subr.mxu0 0.0
    %250 = vmatpush1.msra.mxu0 0.0
    %251 = vmatprep.subr.mxu0 0.0
    %252 = vmatpush1.msra.mxu0 0.0
    %253 = vmatprep.subr.mxu0 0.0
    %254 = vmatpush1.msra.mxu0 0.0
    %255 = vmatprep.subr.mxu0 0.0
    %256 = vmatpush1.msra.mxu0 0.0
    %257 = vmatprep.subr.mxu0 0.0
    %258 = vmatpush1.msra.mxu0 0.0
    %259 = vmatprep.subr.mxu0 0.0
    %260 = vmatpush1.msra.mxu0 0.0
    %261 = vmatprep.subr.mxu0 0.0
    %262 = vmatpush1.msra.mxu0 0.0
    %263 = vmatprep.subr.mxu0 0.0
    %264 = vmatpush1.msra.mxu0 0.0
    %265 = vmatprep.subr.mxu0 0.0
    %266 = vmatpush1.msra.mxu0 0.0
    %267 = vmatprep.subr.mxu0 0.0
    %268 = vmatpush1.msra.mxu0 0.0
    %269 = vmatprep.subr.mxu0 0.0
    %270 = vmatpush1.msra.mxu0 0.0
    %271 = vmatprep.subr.mxu0 0.0
    %272 = vmatpush1.msra.mxu0 0.0
    %273 = vmatprep.mubr.f32.mxu0 0.0
    %274 = vmatmul.mubr.f32.gmra.mrb[0].mxu0 %v207
    %v275 = vpop.f32.mrb[0].mxu0
    %v276 = vadd.f32 %v205, %v275
    %v277 = vpop.f32.mrb[0].mxu0
    %278 = vdwg.mxu0
    %279 = vst [vmem:[#allocation2] sm:$0xf] %v276
    // Predicated region
    $region10: #{tpu_custom_call.1} parent=1 // pred_check
      _
    $region11: #{tpu_custom_call.1} parent=1 // pred_check_branch
      %281 = sbr.rel (0) target = $region13
    $region12: #{tpu_custom_call.1} parent=1 // pred_region
      %s283 = ssub.s32 64, 64
      %284 = vsyncadd [#allocation3], %s283
      %s286 = sshll.u32 [#allocation2], 4
      %s287 = int_to_ptr.vmem [resolvable:$true] %s286
      %289 = dma.vmem_to_hbm [thread:$0]  %s287, 64, %s2, [#allocation3]
    $region13: #{tpu_custom_call.1} parent=1 // pred_fallthru
      _
    // Predicated region
    $region14: #{tpu_custom_call.1} parent=1 // pred_check
      _
    $region15: #{tpu_custom_call.1} parent=1 // pred_check_branch
      %291 = sbr.rel (0) target = $region17
    $region16: #{tpu_custom_call.1} parent=1 // pred_region
      %292 = dma.done [#allocation3], 64
    $region17: #{tpu_custom_call.1} parent=1 // pred_fallthru
      _
    %293 = vsyncpa [#allocation3], 1

</llo_original>
